<compile_context>
chip_gen: v7x
topology: tpu7x:2x2x1
jax: 0.10.0
libtpu: 0.0.40
codegen_flags: <defaults>
</compile_context>

<pallas_src>
import functools

import jax
import jax.numpy as jnp
from jax import lax
from jax.experimental import pallas as pl
from jax.experimental.pallas import tpu as pltpu

FEAT = 128  # lane-dense padded width for hidden dims / weight slabs


def _round_up(x, m):
    return ((x + m - 1) // m) * m


def _dqn_kernel(state_size, out_sub, x_ref, w_ref, b_ref, o_ref):
    """x_ref: (tb, state_size) f32/bf16, streamed over the batch grid axis.
       w_ref: (3, 128, 128) bf16, resident  [w1 | w2 | w3^T], zero padded.
       b_ref: (8 + out_sub, 128) f32, resident [b1 row | b2 row | b3 column @ rows 8+].
       o_ref: (out_sub, tb) f32 — transposed output (actions on sublanes, batch on
              lanes) so the store is a lane-dense, unmasked vst.
    """
    xb = x_ref[...].astype(jnp.bfloat16)                  # (tb, S)

    w1 = w_ref[0, :state_size, :]                         # (S, 128) bf16
    w2 = w_ref[1]                                         # (128, 128) bf16
    w3t = w_ref[2, :out_sub, :]                           # (out_sub, 128) bf16
    b1 = b_ref[0:1, :]                                    # (1, 128) f32
    b2 = b_ref[1:2, :]                                    # (1, 128) f32
    b3c = b_ref[8:8 + out_sub, 0:1]                       # (out_sub, 1) f32

    # Layer 1: bf16 MXU matmul with K = state_size, f32 accumulate; bias+ReLU in f32.
    h1 = jnp.dot(xb, w1, preferred_element_type=jnp.float32) + b1
    h1 = jnp.maximum(h1, 0.0)

    # Layer 2.
    h2 = jnp.dot(h1.astype(jnp.bfloat16), w2,
                 preferred_element_type=jnp.float32) + b2
    h2 = jnp.maximum(h2, 0.0)

    # Layer 3, transposed output: out^T[a, b] = sum_k w3[k, a] * h2[b, k]
    # (NT matmul — no explicit transpose of the activation is materialized).
    o_ref[...] = lax.dot_general(
        w3t, h2.astype(jnp.bfloat16),
        dimension_numbers=(((1,), (1,)), ((), ())),
        preferred_element_type=jnp.float32) + b3c


def dqn_forward(x, w_slab, b_slab, action_size, *, batch_block=4096):
    """x: (batch, state_size) f32/bf16.  Returns (batch, action_size) f32."""
    batch, state_size = x.shape
    out_sub = b_slab.shape[0] - 8
    assert action_size <= out_sub <= FEAT

    # Batch tile: large (per-grid-step overhead ~0.35us dominates this HBM-bound
    # kernel), a multiple of 128 lanes of transposed output, but capped near half
    # the batch so the grid keeps >= 2 steps for v7x's two TensorCores.
    batch_block = max(128, (batch_block // 128) * 128)
    if batch <= 2 * 128:
        tb = _round_up(batch, 8)                                   # single tile
    else:
        tb = min(batch_block, _round_up(pl.cdiv(batch, 2), 128))
    padded_batch = _round_up(batch, tb)
    n_tiles = padded_batch // tb

    xin = x
    if padded_batch != batch:
        # Only the narrow native-width input gets (batch-row) padding.
        xin = jnp.pad(x, ((0, padded_batch - batch), (0, 0)))

    # Deeper pipelining on the streamed operands once the grid is long.
    deep = {"pipeline_mode": pl.Buffered(3)} if n_tiles >= 8 else {}

    out_t = pl.pallas_call(
        functools.partial(_dqn_kernel, state_size, out_sub),
        out_shape=jax.ShapeDtypeStruct((out_sub, padded_batch), jnp.float32),
        grid=(n_tiles,),
        in_specs=[
            pl.BlockSpec((tb, state_size), lambda i: (i, 0), **deep),  # x: streamed, native width
            pl.BlockSpec((3, FEAT, FEAT), lambda i: (0, 0, 0)),        # packed weights: resident
            pl.BlockSpec(b_slab.shape, lambda i: (0, 0)),              # packed biases: resident
        ],
        out_specs=pl.BlockSpec((out_sub, tb), lambda i: (0, i), **deep),
        compiler_params=pltpu.CompilerParams(
            dimension_semantics=("parallel",)),        # shard batch tiles across TCs (v7x)
    )(xin, w_slab, b_slab)

    return out_t[:action_size, :batch].T


def init_dqn_params(key, state_size, action_size, hidden=32):
    """Unpadded f32 params, layout (in_features, out_features) so y = x @ W + b
    (equivalent to PyTorch's x @ W_pt.T + b). PyTorch-style uniform fan-in init."""
    ks = jax.random.split(key, 6)

    def lin(kw, kb, fan_in, fan_out):
        bound = 1.0 / jnp.sqrt(jnp.float32(fan_in))
        w = jax.random.uniform(kw, (fan_in, fan_out), jnp.float32, -bound, bound)
        b = jax.random.uniform(kb, (1, fan_out), jnp.float32, -bound, bound)
        return w, b

    w1, b1 = lin(ks[0], ks[1], state_size, hidden)
    w2, b2 = lin(ks[2], ks[3], hidden, hidden)
    w3, b3 = lin(ks[4], ks[5], hidden, action_size)
    return (w1, b1, w2, b2, w3, b3)


def pack_params(params):
    """Pack weights into one (3,128,128) bf16 slab (w3 stored transposed) and all
    biases into one (8 + out_sub, 128) f32 slab (b1/b2 as rows, b3 as a column)."""
    w1, b1, w2, b2, w3, b3 = params
    state_size, hidden = w1.shape
    action_size = w3.shape[1]
    out_sub = _round_up(action_size, 8)
    assert state_size <= FEAT and hidden <= FEAT and out_sub <= FEAT

    w = jnp.zeros((3, FEAT, FEAT), jnp.bfloat16)
    w = w.at[0, :state_size, :hidden].set(w1.astype(jnp.bfloat16))
    w = w.at[1, :hidden, :hidden].set(w2.astype(jnp.bfloat16))
    w = w.at[2, :action_size, :hidden].set(w3.T.astype(jnp.bfloat16))

    b = jnp.zeros((8 + out_sub, FEAT), jnp.float32)
    b = b.at[0, :hidden].set(b1.reshape(-1))
    b = b.at[1, :hidden].set(b2.reshape(-1))
    b = b.at[8:8 + action_size, 0].set(b3.reshape(-1))
    return w, b


def dqn_reference_f32(x, params):
    w1, b1, w2, b2, w3, b3 = params
    h1 = jnp.maximum(x @ w1 + b1, 0.0)
    h2 = jnp.maximum(h1 @ w2 + b2, 0.0)
    return h2 @ w3 + b3


def dqn_reference_mixed(x, params):
    """Same bf16-operand / f32-accumulate math as the kernel (tight tolerance check)."""
    w1, b1, w2, b2, w3, b3 = params
    h1 = jnp.maximum(
        jnp.dot(x.astype(jnp.bfloat16), w1.astype(jnp.bfloat16),
                preferred_element_type=jnp.float32) + b1, 0.0)
    h2 = jnp.maximum(
        jnp.dot(h1.astype(jnp.bfloat16), w2.astype(jnp.bfloat16),
                preferred_element_type=jnp.float32) + b2, 0.0)
    return jnp.dot(h2.astype(jnp.bfloat16), w3.astype(jnp.bfloat16),
                   preferred_element_type=jnp.float32) + b3


if __name__ == "__main__":
    batch = 512          # -> 2 batch tiles of 256: exercises the grid / both v7x TCs
    state_size = 16
    action_size = 4
    hidden = 32

    key = jax.random.PRNGKey(0)
    k_x, k_p = jax.random.split(key)
    x = jax.random.normal(k_x, (batch, state_size), jnp.float32)

    params = init_dqn_params(k_p, state_size, action_size, hidden)
    w_slab, b_slab = pack_params(params)

    fwd = jax.jit(functools.partial(dqn_forward, action_size=action_size))
    out = jax.block_until_ready(fwd(x, w_slab, b_slab))
    assert out.shape == (batch, action_size)

    # Tight check against a JAX reference using the same bf16/f32 mixed precision.
    ref_mixed = dqn_reference_mixed(x, params)
    assert jnp.allclose(out, ref_mixed, atol=2e-3, rtol=2e-3), \
        float(jnp.max(jnp.abs(out - ref_mixed)))

    # Sanity check against the pure f32 PyTorch-equivalent forward (bf16 rounding slack).
    ref_f32 = dqn_reference_f32(x, params)
    assert jnp.allclose(out, ref_f32, atol=5e-2, rtol=5e-2), \
        float(jnp.max(jnp.abs(out - ref_f32)))

    print("KERNEL_OK")
</pallas_src>

<mosaic_0001>
module attributes {stable_mosaic.version = 11 : i64} {
  func.func @_dqn_kernel(%arg0: i32, %arg1: memref<256x16xf32, #tpu.memory_space<vmem>>, %arg2: memref<3x128x128xbf16, #tpu.memory_space<vmem>>, %arg3: memref<16x128xf32, #tpu.memory_space<vmem>>, %arg4: memref<8x256xf32, #tpu.memory_space<vmem>>) attributes {dimension_semantics = [#tpu.dimension_semantics<parallel>], iteration_bounds = array<i64: 2>, scalar_prefetch = 0 : i64, scratch_operands = 0 : i64, tpu.core_type = #tpu.core_type<tc>, window_params = [{transform_indices = @transform_0, window_bounds = array<i64: 256, 16>}, {pipeline_mode = #tpu.pipeline_mode<synchronous>, transform_indices = @transform_1, window_bounds = array<i64: 3, 128, 128>}, {pipeline_mode = #tpu.pipeline_mode<synchronous>, transform_indices = @transform_2, window_bounds = array<i64: 16, 128>}, {transform_indices = @transform_3, window_bounds = array<i64: 8, 256>}]} {
    %c0 = arith.constant 0 : index
    %c0_0 = arith.constant 0 : index
    %0 = vector.load %arg1[%c0, %c0_0] : memref<256x16xf32, #tpu.memory_space<vmem>>, vector<256x16xf32>
    %1 = arith.truncf %0 : vector<256x16xf32> to vector<256x16xbf16>
    %c0_1 = arith.constant 0 : index
    %c0_2 = arith.constant 0 : index
    %c0_3 = arith.constant 0 : index
    %2 = vector.load %arg2[%c0_1, %c0_2, %c0_3] : memref<3x128x128xbf16, #tpu.memory_space<vmem>>, vector<1x16x128xbf16>
    %3 = vector.shape_cast %2 : vector<1x16x128xbf16> to vector<16x128xbf16>
    %c1 = arith.constant 1 : index
    %c0_4 = arith.constant 0 : index
    %c0_5 = arith.constant 0 : index
    %4 = vector.load %arg2[%c1, %c0_4, %c0_5] : memref<3x128x128xbf16, #tpu.memory_space<vmem>>, vector<1x128x128xbf16>
    %5 = vector.shape_cast %4 : vector<1x128x128xbf16> to vector<128x128xbf16>
    %c2 = arith.constant 2 : index
    %c0_6 = arith.constant 0 : index
    %c0_7 = arith.constant 0 : index
    %6 = vector.load %arg2[%c2, %c0_6, %c0_7] : memref<3x128x128xbf16, #tpu.memory_space<vmem>>, vector<1x8x128xbf16>
    %7 = vector.shape_cast %6 : vector<1x8x128xbf16> to vector<8x128xbf16>
    %c0_8 = arith.constant 0 : index
    %c0_9 = arith.constant 0 : index
    %8 = vector.load %arg3[%c0_8, %c0_9] : memref<16x128xf32, #tpu.memory_space<vmem>>, vector<1x128xf32>
    %c1_10 = arith.constant 1 : index
    %c0_11 = arith.constant 0 : index
    %9 = vector.load %arg3[%c1_10, %c0_11] : memref<16x128xf32, #tpu.memory_space<vmem>>, vector<1x128xf32>
    %c8 = arith.constant 8 : index
    %c0_12 = arith.constant 0 : index
    %10 = vector.load %arg3[%c8, %c0_12] : memref<16x128xf32, #tpu.memory_space<vmem>>, vector<8x1xf32>
    %cst = arith.constant dense<0.000000e+00> : vector<256x128xf32>
    %11 = tpu.matmul %1, %3, %cst {dimension_numbers = #tpu.dot_dimension_numbers<[1], [0], [0], [1], [0, 0, 1, 1], [], []>} : vector<256x16xbf16>, vector<16x128xbf16>, vector<256x128xf32> -> vector<256x128xf32>
    %12 = vector.broadcast %8 : vector<1x128xf32> to vector<256x128xf32>
    %13 = arith.addf %11, %12 : vector<256x128xf32>
    %cst_13 = arith.constant 0.000000e+00 : f32
    %14 = vector.broadcast %cst_13 : f32 to vector<256x128xf32>
    %15 = arith.maximumf %13, %14 : vector<256x128xf32>
    %16 = arith.truncf %15 : vector<256x128xf32> to vector<256x128xbf16>
    %cst_14 = arith.constant dense<0.000000e+00> : vector<256x128xf32>
    %17 = tpu.matmul %16, %5, %cst_14 {dimension_numbers = #tpu.dot_dimension_numbers<[1], [0], [0], [1], [0, 0, 1, 1], [], []>} : vector<256x128xbf16>, vector<128x128xbf16>, vector<256x128xf32> -> vector<256x128xf32>
    %18 = vector.broadcast %9 : vector<1x128xf32> to vector<256x128xf32>
    %19 = arith.addf %17, %18 : vector<256x128xf32>
    %cst_15 = arith.constant 0.000000e+00 : f32
    %20 = vector.broadcast %cst_15 : f32 to vector<256x128xf32>
    %21 = arith.maximumf %19, %20 : vector<256x128xf32>
    %22 = arith.truncf %21 : vector<256x128xf32> to vector<256x128xbf16>
    %cst_16 = arith.constant dense<0.000000e+00> : vector<8x256xf32>
    %23 = tpu.matmul %7, %22, %cst_16 {dimension_numbers = #tpu.dot_dimension_numbers<[1], [1], [0], [0], [0, 0, 1, 0], [], []>} : vector<8x128xbf16>, vector<256x128xbf16>, vector<8x256xf32> -> vector<8x256xf32>
    %24 = vector.broadcast %10 : vector<8x1xf32> to vector<8x256xf32>
    %25 = arith.addf %23, %24 : vector<8x256xf32>
    %c0_17 = arith.constant 0 : index
    %c0_18 = arith.constant 0 : index
    %26 = vector.load %arg4[%c0_17, %c0_18] : memref<8x256xf32, #tpu.memory_space<vmem>>, vector<8x256xf32>
    tpu.vector_store %arg4[%c0_17, %c0_18], %25 {strides = array<i32>} : memref<8x256xf32, #tpu.memory_space<vmem>>, vector<8x256xf32>,
    return
  }
  func.func @transform_0(%arg0: i32) -> (i32, i32) {
    %c0_i32 = arith.constant 0 : i32
    %c0_i32_0 = arith.constant 0 : i32
    return %arg0, %c0_i32 : i32, i32
  }
  func.func @transform_1(%arg0: i32) -> (i32, i32, i32) {
    %c0_i32 = arith.constant 0 : i32
    %c0_i32_0 = arith.constant 0 : i32
    %c0_i32_1 = arith.constant 0 : i32
    %c0_i32_2 = arith.constant 0 : i32
    return %c0_i32, %c0_i32_0, %c0_i32_1 : i32, i32, i32
  }
  func.func @transform_2(%arg0: i32) -> (i32, i32) {
    %c0_i32 = arith.constant 0 : i32
    %c0_i32_0 = arith.constant 0 : i32
    %c0_i32_1 = arith.constant 0 : i32
    return %c0_i32, %c0_i32_0 : i32, i32
  }
  func.func @transform_3(%arg0: i32) -> (i32, i32) {
    %c0_i32 = arith.constant 0 : i32
    %c0_i32_0 = arith.constant 0 : i32
    return %c0_i32, %arg0 : i32, i32
  }
}

</mosaic_0001>

<llo_original>
// kernel: dqn_forward.1
$region0: #{dqn_forward.1}
  #allocation0 [shape = 'u32[]', space=smem, size = 0x4, offset = 0x4, fixed_abs, tag = 'smem constant byte address 0x4 - core index']
  #allocation1 [shape = 'u32[144,128]{1,0:T(1,128)}', space=vmem, size = 0x12000, scoped, tag = 'internal scratch']
  %s0 = inlined_call_operand.vmem [shape: f32[512,16], index: 0, kind: input, shape index: {}]
  %s1 = inlined_call_operand.vmem [shape: bf16[3,128,128], index: 1, kind: input, shape index: {}]
  %s2 = inlined_call_operand.vmem [shape: f32[16,128], index: 2, kind: input, shape index: {}]
  %s3 = inlined_call_operand.vmem [shape: f32[8,512], index: 3, kind: output, shape index: {}]
  %s4 = sld [smem:[#allocation0]]
  $region45: #{dqn_forward.1} parent=0
    _
  %s6 = ssub.s32 1, %s4
  %s7 = scalar_select 0, %s6, %s4
  loop: start=0, step=1, limit=4
  $region2: #{dqn_forward.1} parent=0 // loop_pre_header
    _
  $region3: #{dqn_forward.1} parent=0 // loop_header
    %s9 = sphi 0, %s13
    %p10 = scmp.ge.s32.totalorder %s9, 4
    %s19 = sphi 0, %s21
    %s22 = sphi 0, %s19
    %s23 = sphi 0, %s22
    %s39 = sphi 0, %s23
    %s43 = sphi 0, %s43
    %s45 = sphi 0, %s43
    %s46 = sphi 0, %s45
    %s60 = sphi 0, %s46
    %s64 = sphi 0, %s64
    %s66 = sphi 0, %s64
    %s67 = sphi 0, %s66
    %s81 = sphi 0, %s67
    %s87 = sphi 0, %s89
    %s90 = sphi 0, %s87
    %s91 = sphi 0, %s90
    %s107 = sphi 0, %s91
  $region4: #{dqn_forward.1} parent=0 // loop_header_branch
    %12 = sbr.rel (%p10) target = $region8
  $region5: #{dqn_forward.1} parent=0 // loop_body
    %s14 = ssub.s32 %s9, 1
    %s15 = ssub.s32 %s9, 2
    %s16 = sadd.s32 %s9, 1
    %s17 = ssub.s32 %s9, %s16
    %p18 = scmp.eq.s32.totalorder %s17, 0
    %s20 = sadd.s32 %s19, 1
    %s21 = scalar_select %p18, %s19, %s20
    %p24 = pneg %p18
    %p25 = scmp.eq.s32.totalorder %s9, 1
    %p26 = por %p24, %p25
    %p27 = scmp.ne.s32.totalorder %s19, %s22
    %p28 = scmp.eq.s32.totalorder %s9, 0
    %p29 = por %p27, %p28
    %p30 = scmp.ne.s32.totalorder %s19, %s22
    %p31 = scmp.eq.s32.totalorder %s14, 1
    %p32 = por %p30, %p31
    %p33 = scmp.ne.s32.totalorder %s22, %s23
    %p34 = scmp.eq.s32.totalorder %s14, 0
    %p35 = por %p33, %p34
    %p36 = scmp.ne.s32.totalorder %s22, %s23
    %p37 = scmp.eq.s32.totalorder %s15, 1
    %p38 = por %p36, %p37
    %p40 = scmp.ne.s32.totalorder %s23, %s39
    %p41 = scmp.eq.s32.totalorder %s15, 0
    %p42 = por %p40, %p41
    %s44 = sadd.s32 %s43, 1
    %p47 = scmp.eq.s32.totalorder %s9, 1
    %p48 = scmp.ne.s32.totalorder %s43, %s45
    %p49 = scmp.eq.s32.totalorder %s9, 0
    %p50 = por %p48, %p49
    %p51 = scmp.ne.s32.totalorder %s43, %s45
    %p52 = scmp.eq.s32.totalorder %s14, 1
    %p53 = por %p51, %p52
    %p54 = scmp.ne.s32.totalorder %s45, %s46
    %p55 = scmp.eq.s32.totalorder %s14, 0
    %p56 = por %p54, %p55
    %p57 = scmp.ne.s32.totalorder %s45, %s46
    %p58 = scmp.eq.s32.totalorder %s15, 1
    %p59 = por %p57, %p58
    %p61 = scmp.ne.s32.totalorder %s46, %s60
    %p62 = scmp.eq.s32.totalorder %s15, 0
    %p63 = por %p61, %p62
    %s65 = sadd.s32 %s64, 1
    %p68 = scmp.eq.s32.totalorder %s9, 1
    %p69 = scmp.ne.s32.totalorder %s64, %s66
    %p70 = scmp.eq.s32.totalorder %s9, 0
    %p71 = por %p69, %p70
    %p72 = scmp.ne.s32.totalorder %s64, %s66
    %p73 = scmp.eq.s32.totalorder %s14, 1
    %p74 = por %p72, %p73
    %p75 = scmp.ne.s32.totalorder %s66, %s67
    %p76 = scmp.eq.s32.totalorder %s14, 0
    %p77 = por %p75, %p76
    %p78 = scmp.ne.s32.totalorder %s66, %s67
    %p79 = scmp.eq.s32.totalorder %s15, 1
    %p80 = por %p78, %p79
    %p82 = scmp.ne.s32.totalorder %s67, %s81
    %p83 = scmp.eq.s32.totalorder %s15, 0
    %p84 = por %p82, %p83
    %s85 = ssub.s32 %s9, %s16
    %p86 = scmp.eq.s32.totalorder %s85, 0
    %s88 = sadd.s32 %s87, 1
    %s89 = scalar_select %p86, %s87, %s88
    %p92 = pneg %p86
    %p93 = scmp.eq.s32.totalorder %s9, 1
    %p94 = por %p92, %p93
    %p95 = scmp.ne.s32.totalorder %s87, %s90
    %p96 = scmp.eq.s32.totalorder %s9, 0
    %p97 = por %p95, %p96
    %p98 = scmp.ne.s32.totalorder %s87, %s90
    %p99 = scmp.eq.s32.totalorder %s14, 1
    %p100 = por %p98, %p99
    %p101 = scmp.ne.s32.totalorder %s90, %s91
    %p102 = scmp.eq.s32.totalorder %s14, 0
    %p103 = por %p101, %p102
    %p104 = scmp.ne.s32.totalorder %s90, %s91
    %p105 = scmp.eq.s32.totalorder %s15, 1
    %p106 = por %p104, %p105
    %p108 = scmp.ne.s32.totalorder %s91, %s107
    %p109 = scmp.eq.s32.totalorder %s15, 0
    %p110 = por %p108, %p109
    %p111 = scmp.le.s32.totalorder 1, %s9
    %p112 = scmp.lt.s32.totalorder %s9, 3
    %p113 = pnand %p111, %p112
    %p114 = pneg %p113
    // Predicated region
    $region9: #{dqn_forward.1} parent=5 // pred_check
      _
    $region10: #{dqn_forward.1} parent=5 // pred_check_branch
      %116 = sbr.rel (%p113) target = $region12
    $region11: #{dqn_forward.1} parent=5 // pred_region
      %s117 = ssub.s32 %s9, 1
      // Predicated region
      $region13: #{dqn_forward.1} parent=11 // pred_check
        %p118 = pneg %p56
      $region14: #{dqn_forward.1} parent=11 // pred_check_branch
        %120 = sbr.rel (%p118) target = $region16
      $region15: #{dqn_forward.1} parent=11 // pred_region
        _
      $region16: #{dqn_forward.1} parent=11 // pred_fallthru
        _
      // Predicated region
      $region17: #{dqn_forward.1} parent=11 // pred_check
        %p121 = pneg %p77
      $region18: #{dqn_forward.1} parent=11 // pred_check_branch
        %123 = sbr.rel (%p121) target = $region20
      $region19: #{dqn_forward.1} parent=11 // pred_region
        _
      $region20: #{dqn_forward.1} parent=11 // pred_fallthru
        _
    $region12: #{dqn_forward.1} parent=5 // pred_fallthru
      _
    %p124 = scmp.lt.s32.totalorder %s9, 2
    // Predicated region
    $region21: #{dqn_forward.1} parent=5 // pred_check
      %p125 = pneg %p124
    $region22: #{dqn_forward.1} parent=5 // pred_check_branch
      %127 = sbr.rel (%p125) target = $region24
    $region23: #{dqn_forward.1} parent=5 // pred_region
      // Predicated region
      $region25: #{dqn_forward.1} parent=23 // pred_check
        %p128 = pneg %p29
      $region26: #{dqn_forward.1} parent=23 // pred_check_branch
        %130 = sbr.rel (%p128) target = $region28
      $region27: #{dqn_forward.1} parent=23 // pred_region
        %s131 = smul.u32 32, %s9
        %p132 = scmp.lt.s32.totalorder %s131, 63
        %s133 = scalar_select %p132, %s131, 63
        %s134 = smul.addr %s133, 8
        %s135 = scalar_lea.vmem %s0, %s134
        %s136 = smul.u32 32, %s9
      $region28: #{dqn_forward.1} parent=23 // pred_fallthru
        _
    $region24: #{dqn_forward.1} parent=5 // pred_fallthru
      _
    %p137 = scmp.le.s32.totalorder 1, %s9
    %p138 = scmp.lt.s32.totalorder %s9, 3
    %p139 = pnand %p137, %p138
    %p140 = pneg %p139
    // Predicated region
    $region29: #{dqn_forward.1} parent=5 // pred_check
      _
    $region30: #{dqn_forward.1} parent=5 // pred_check_branch
      %142 = sbr.rel (%p139) target = $region32
    $region31: #{dqn_forward.1} parent=5 // pred_region
      %s143 = ssub.s32 %s9, 1
      %s144 = smul.u32 32, %s14
      %p145 = scmp.lt.s32.totalorder %s144, 63
      %s146 = scalar_select %p145, %s144, 63
      %s147 = smul.addr %s146, 8
      %s148 = scalar_lea.vmem %s0, %s147
      %p149 = pneg %p35
      %p150 = pneg %p32
      %p151 = pneg %p56
      %p152 = pneg %p53
      %p153 = pneg %p77
      %p154 = pneg %p74
      %p155 = pneg %p103
      %p156 = pneg %p100
      %s157 = smul.u32 2, %s14
      %p158 = scmp.lt.s32.totalorder %s157, 3
      %s159 = scalar_select %p158, %s157, 3
      %s160 = smul.addr %s159, 8
      %s161 = scalar_lea.vmem %s3, %s160
      %s162 = smul.u32 32, %s14
      %p163 = scmp.lt.s32.totalorder %s162, 63
      %s164 = scalar_select %p163, %s162, 63
      %s165 = smul.addr %s164, 8
      %s166 = scalar_lea.vmem %s0, %s165
      %s167 = smul.u32 32, %s14
      %s168 = smul.u32 2, %s14
      %p169 = scmp.lt.s32.totalorder %s168, 3
      %s170 = scalar_select %p169, %s168, 3
      %s171 = smul.addr %s170, 8
      %s172 = scalar_lea.vmem %s3, %s171
      %s173 = smul.u32 2, %s14
      %v175 = vld [vmem:[%s166] sm:$0xff]
      %v176 = vld [vmem:[%s166 + $0x8] sm:$0xff]
      %v177 = vld [vmem:[%s166 + $0x10] sm:$0xff]
      %v178 = vld [vmem:[%s166 + $0x18] sm:$0xff]
      %v179 = vld [vmem:[%s166 + $0x20] sm:$0xff]
      %v180 = vld [vmem:[%s166 + $0x28] sm:$0xff]
      %v181 = vld [vmem:[%s166 + $0x30] sm:$0xff]
      %v182 = vld [vmem:[%s166 + $0x38] sm:$0xff]
      %v183 = vld [vmem:[%s166 + $0x40] sm:$0xff]
      %v184 = vld [vmem:[%s166 + $0x48] sm:$0xff]
      %v185 = vld [vmem:[%s166 + $0x50] sm:$0xff]
      %v186 = vld [vmem:[%s166 + $0x58] sm:$0xff]
      %v187 = vld [vmem:[%s166 + $0x60] sm:$0xff]
      %v188 = vld [vmem:[%s166 + $0x68] sm:$0xff]
      %v189 = vld [vmem:[%s166 + $0x70] sm:$0xff]
      %v190 = vld [vmem:[%s166 + $0x78] sm:$0xff]
      %v191 = vld [vmem:[%s166 + $0x80] sm:$0xff]
      %v192 = vld [vmem:[%s166 + $0x88] sm:$0xff]
      %v193 = vld [vmem:[%s166 + $0x90] sm:$0xff]
      %v194 = vld [vmem:[%s166 + $0x98] sm:$0xff]
      %v195 = vld [vmem:[%s166 + $0xa0] sm:$0xff]
      %v196 = vld [vmem:[%s166 + $0xa8] sm:$0xff]
      %v197 = vld [vmem:[%s166 + $0xb0] sm:$0xff]
      %v198 = vld [vmem:[%s166 + $0xb8] sm:$0xff]
      %v199 = vld [vmem:[%s166 + $0xc0] sm:$0xff]
      %v200 = vld [vmem:[%s166 + $0xc8] sm:$0xff]
      %v201 = vld [vmem:[%s166 + $0xd0] sm:$0xff]
      %v202 = vld [vmem:[%s166 + $0xd8] sm:$0xff]
      %v203 = vld [vmem:[%s166 + $0xe0] sm:$0xff]
      %v204 = vld [vmem:[%s166 + $0xe8] sm:$0xff]
      %v205 = vld [vmem:[%s166 + $0xf0] sm:$0xff]
      %v206 = vld [vmem:[%s166 + $0xf8] sm:$0xff]
      %v207 = vpack.c.bf16 %v176, %v175
      %v208 = vpack.c.bf16 %v178, %v177
      %v209 = vpack.c.bf16 %v180, %v179
      %v210 = vpack.c.bf16 %v182, %v181
      %v211 = vpack.c.bf16 %v184, %v183
      %v212 = vpack.c.bf16 %v186, %v185
      %v213 = vpack.c.bf16 %v188, %v187
      %v214 = vpack.c.bf16 %v190, %v189
      %v215 = vpack.c.bf16 %v192, %v191
      %v216 = vpack.c.bf16 %v194, %v193
      %v217 = vpack.c.bf16 %v196, %v195
      %v218 = vpack.c.bf16 %v198, %v197
      %v219 = vpack.c.bf16 %v200, %v199
      %v220 = vpack.c.bf16 %v202, %v201
      %v221 = vpack.c.bf16 %v204, %v203
      %v222 = vpack.c.bf16 %v206, %v205
      %v223 = vld [vmem:[%s1] sm:$0xf]
      %v224 = vld [vmem:[%s1 + $0x4] sm:$0xf]
      %s225 = scalar_lea.vmem %s1, 64
      %v226 = vld [vmem:[%s225] sm:$0xf]
      %v227 = vld [vmem:[%s225 + $0x4] sm:$0xf]
      %v228 = vld [vmem:[%s225 + $0x8] sm:$0xf]
      %v229 = vld [vmem:[%s225 + $0xc] sm:$0xf]
      %v230 = vld [vmem:[%s225 + $0x10] sm:$0xf]
      %v231 = vld [vmem:[%s225 + $0x14] sm:$0xf]
      %v232 = vld [vmem:[%s225 + $0x18] sm:$0xf]
      %v233 = vld [vmem:[%s225 + $0x1c] sm:$0xf]
      %v234 = vld [vmem:[%s225 + $0x20] sm:$0xf]
      %v235 = vld [vmem:[%s225 + $0x24] sm:$0xf]
      %v236 = vld [vmem:[%s225 + $0x28] sm:$0xf]
      %v237 = vld [vmem:[%s225 + $0x2c] sm:$0xf]
      %v238 = vld [vmem:[%s225 + $0x30] sm:$0xf]
      %v239 = vld [vmem:[%s225 + $0x34] sm:$0xf]
      %v240 = vld [vmem:[%s225 + $0x38] sm:$0xf]
      %v241 = vld [vmem:[%s225 + $0x3c] sm:$0xf]
      %s242 = scalar_lea.vmem %s1, 128
      %v243 = vld [vmem:[%s242] sm:$0xf]
      %v244 = vld [vmem:[%s2] sm:$0x1]
      %v245 = vld [vmem:[%s2 + $0x1] sm:$0x1]
      %v246 = vld [vmem:[%s2 + $0x8] sm:$0xff]
      %v247 = vlaneseq
      %v248 = vshrl.u32 %v247, 7
      %v249 = vsub.s32 0, %v248
      %v250 = vrot.slane %v244, %v249
      %v253 = vunpack.c.l.b16 %v223
      %v254 = vunpack.c.l.b16 %v224
      %v255 = vpack.c.b16 %v254, %v253
      %vm257 = vcmask 130048
      %v259 = vsel %vm257, %v207, 0
      %v262 = vsel %vm257, %v208, 0
      %v265 = vsel %vm257, %v209, 0
      %v268 = vsel %vm257, %v210, 0
      %v271 = vsel %vm257, %v211, 0
      %v274 = vsel %vm257, %v212, 0
      %v277 = vsel %vm257, %v213, 0
      %v280 = vsel %vm257, %v214, 0
      %v283 = vsel %vm257, %v215, 0
      %v286 = vsel %vm257, %v216, 0
      %v289 = vsel %vm257, %v217, 0
      %v292 = vsel %vm257, %v218, 0
      %v295 = vsel %vm257, %v219, 0
      %v298 = vsel %vm257, %v220, 0
      %v301 = vsel %vm257, %v221, 0
      %v304 = vsel %vm257, %v222, 0
      %306 = vmatprep.subr.bf16.mxu0 0
      %307 = vmatpush1.bf16.msra.mxu0 %v255
      %308 = vmatprep.subr.bf16.mxu0 0
      %309 = vmatpush1.bf16.msra.mxu0 0
      %310 = vmatprep.subr.bf16.mxu0 0
      %311 = vmatpush1.bf16.msra.mxu0 0
      %312 = vmatprep.subr.bf16.mxu0 0
      %313 = vmatpush1.bf16.msra.mxu0 0
      %314 = vmatprep.subr.bf16.mxu0 0
      %315 = vmatpush1.bf16.msra.mxu0 0
      %316 = vmatprep.subr.bf16.mxu0 0
      %317 = vmatpush1.bf16.msra.mxu0 0
      %318 = vmatprep.subr.bf16.mxu0 0
      %319 = vmatpush1.bf16.msra.mxu0 0
      %320 = vmatprep.subr.bf16.mxu0 0
      %321 = vmatpush1.bf16.msra.mxu0 0
      %322 = vmatprep.subr.bf16.mxu0 0
      %323 = vmatpush1.bf16.msra.mxu0 0
      %324 = vmatprep.subr.bf16.mxu0 0
      %325 = vmatpush1.bf16.msra.mxu0 0
      %326 = vmatprep.subr.bf16.mxu0 0
      %327 = vmatpush1.bf16.msra.mxu0 0
      %328 = vmatprep.subr.bf16.mxu0 0
      %329 = vmatpush1.bf16.msra.mxu0 0
      %330 = vmatprep.subr.bf16.mxu0 0
      %331 = vmatpush1.bf16.msra.mxu0 0
      %332 = vmatprep.subr.bf16.mxu0 0
      %333 = vmatpush1.bf16.msra.mxu0 0
      %334 = vmatprep.subr.bf16.mxu0 0
      %335 = vmatpush1.bf16.msra.mxu0 0
      %336 = vmatprep.subr.bf16.mxu0 0
      %337 = vmatpush1.bf16.msra.mxu0 0
      %338 = vmatprep.mubr.bf16.mxu0 0
      %339 = vmatmul.mubr.bf16.gmra.mrb[0].mxu0 %v259
      %v340 = vpop.f32.mrb[0].mxu0
      %v341 = vadd.f32 %v250, %v340
      %v342 = vpop.f32.mrb[0].mxu0
      %v343 = vpop.f32.mrb[0].mxu0
      %v344 = vadd.f32 %v250, %v343
      %v345 = vpop.f32.mrb[0].mxu0
      %346 = vmatprep.mubr.bf16.mxu0 0
      %347 = vmatmul.mubr.bf16.gmra.mrb[0].mxu0 %v262
      %v348 = vpop.f32.mrb[0].mxu0
      %v349 = vadd.f32 %v250, %v348
      %v350 = vpop.f32.mrb[0].mxu0
      %v351 = vpop.f32.mrb[0].mxu0
      %v352 = vadd.f32 %v250, %v351
      %v353 = vpop.f32.mrb[0].mxu0
      %354 = vmatprep.mubr.bf16.mxu0 0
      %355 = vmatmul.mubr.bf16.gmra.mrb[0].mxu0 %v265
      %v356 = vpop.f32.mrb[0].mxu0
      %v357 = vadd.f32 %v250, %v356
      %v358 = vpop.f32.mrb[0].mxu0
      %v359 = vpop.f32.mrb[0].mxu0
      %v360 = vadd.f32 %v250, %v359
      %v361 = vpop.f32.mrb[0].mxu0
      %362 = vmatprep.mubr.bf16.mxu0 0
      %363 = vmatmul.mubr.bf16.gmra.mrb[0].mxu0 %v268
      %v364 = vpop.f32.mrb[0].mxu0
      %v365 = vadd.f32 %v250, %v364
      %v366 = vpop.f32.mrb[0].mxu0
      %v367 = vpop.f32.mrb[0].mxu0
      %v368 = vadd.f32 %v250, %v367
      %v369 = vpop.f32.mrb[0].mxu0
      %370 = vmatprep.mubr.bf16.mxu0 0
      %371 = vmatmul.mubr.bf16.gmra.mrb[0].mxu0 %v271
      %v372 = vpop.f32.mrb[0].mxu0
      %v373 = vadd.f32 %v250, %v372
      %v374 = vpop.f32.mrb[0].mxu0
      %v375 = vpop.f32.mrb[0].mxu0
      %v376 = vadd.f32 %v250, %v375
      %v377 = vpop.f32.mrb[0].mxu0
      %378 = vmatprep.mubr.bf16.mxu0 0
      %379 = vmatmul.mubr.bf16.gmra.mrb[0].mxu0 %v274
      %v380 = vpop.f32.mrb[0].mxu0
      %v381 = vadd.f32 %v250, %v380
      %v382 = vpop.f32.mrb[0].mxu0
      %v383 = vpop.f32.mrb[0].mxu0
      %v384 = vadd.f32 %v250, %v383
      %v385 = vpop.f32.mrb[0].mxu0
      %386 = vmatprep.mubr.bf16.mxu0 0
      %387 = vmatmul.mubr.bf16.gmra.mrb[0].mxu0 %v277
      %v388 = vpop.f32.mrb[0].mxu0
      %v389 = vadd.f32 %v250, %v388
      %v390 = vpop.f32.mrb[0].mxu0
      %v391 = vpop.f32.mrb[0].mxu0
      %v392 = vadd.f32 %v250, %v391
      %v393 = vpop.f32.mrb[0].mxu0
      %394 = vmatprep.mubr.bf16.mxu0 0
      %395 = vmatmul.mubr.bf16.gmra.mrb[0].mxu0 %v280
      %v396 = vpop.f32.mrb[0].mxu0
      %v397 = vadd.f32 %v250, %v396
      %v398 = vpop.f32.mrb[0].mxu0
      %v399 = vpop.f32.mrb[0].mxu0
      %v400 = vadd.f32 %v250, %v399
      %v401 = vpop.f32.mrb[0].mxu0
      %402 = vmatprep.mubr.bf16.mxu0 0
      %403 = vmatmul.mubr.bf16.gmra.mrb[0].mxu0 %v283
      %v404 = vpop.f32.mrb[0].mxu0
      %v405 = vadd.f32 %v250, %v404
      %v406 = vpop.f32.mrb[0].mxu0
      %v407 = vpop.f32.mrb[0].mxu0
      %v408 = vadd.f32 %v250, %v407
      %v409 = vpop.f32.mrb[0].mxu0
      %410 = vmatprep.mubr.bf16.mxu0 0
      %411 = vmatmul.mubr.bf16.gmra.mrb[0].mxu0 %v286
      %v412 = vpop.f32.mrb[0].mxu0
      %v413 = vadd.f32 %v250, %v412
      %v414 = vpop.f32.mrb[0].mxu0
      %v415 = vpop.f32.mrb[0].mxu0
      %v416 = vadd.f32 %v250, %v415
      %v417 = vpop.f32.mrb[0].mxu0
      %418 = vmatprep.mubr.bf16.mxu0 0
      %419 = vmatmul.mubr.bf16.gmra.mrb[0].mxu0 %v289
      %v420 = vpop.f32.mrb[0].mxu0
      %v421 = vadd.f32 %v250, %v420
      %v422 = vpop.f32.mrb[0].mxu0
      %v423 = vpop.f32.mrb[0].mxu0
      %v424 = vadd.f32 %v250, %v423
      %v425 = vpop.f32.mrb[0].mxu0
      %426 = vmatprep.mubr.bf16.mxu0 0
      %427 = vmatmul.mubr.bf16.gmra.mrb[0].mxu0 %v292
      %v428 = vpop.f32.mrb[0].mxu0
      %v429 = vadd.f32 %v250, %v428
      %v430 = vpop.f32.mrb[0].mxu0
      %v431 = vpop.f32.mrb[0].mxu0
      %v432 = vadd.f32 %v250, %v431
      %v433 = vpop.f32.mrb[0].mxu0
      %434 = vmatprep.mubr.bf16.mxu0 0
      %435 = vmatmul.mubr.bf16.gmra.mrb[0].mxu0 %v295
      %v436 = vpop.f32.mrb[0].mxu0
      %v437 = vadd.f32 %v250, %v436
      %v438 = vpop.f32.mrb[0].mxu0
      %v439 = vpop.f32.mrb[0].mxu0
      %v440 = vadd.f32 %v250, %v439
      %v441 = vpop.f32.mrb[0].mxu0
      %442 = vmatprep.mubr.bf16.mxu0 0
      %443 = vmatmul.mubr.bf16.gmra.mrb[0].mxu0 %v298
      %v444 = vpop.f32.mrb[0].mxu0
      %v445 = vadd.f32 %v250, %v444
      %v446 = vpop.f32.mrb[0].mxu0
      %v447 = vpop.f32.mrb[0].mxu0
      %v448 = vadd.f32 %v250, %v447
      %v449 = vpop.f32.mrb[0].mxu0
      %450 = vmatprep.mubr.bf16.mxu0 0
      %451 = vmatmul.mubr.bf16.gmra.mrb[0].mxu0 %v301
      %v452 = vpop.f32.mrb[0].mxu0
      %v453 = vadd.f32 %v250, %v452
      %v454 = vpop.f32.mrb[0].mxu0
      %v455 = vpop.f32.mrb[0].mxu0
      %v456 = vadd.f32 %v250, %v455
      %v457 = vpop.f32.mrb[0].mxu0
      %458 = vmatprep.mubr.bf16.mxu0 0
      %459 = vmatmul.mubr.bf16.gmra.mrb[0].mxu0 %v304
      %v460 = vpop.f32.mrb[0].mxu0
      %v461 = vadd.f32 %v250, %v460
      %v462 = vpop.f32.mrb[0].mxu0
      %v463 = vpop.f32.mrb[0].mxu0
      %v464 = vadd.f32 %v250, %v463
      %v465 = vpop.f32.mrb[0].mxu0
      %466 = vdwg.mxu0
      %v467 = vmax.f32 %v341, 0.0
      %v468 = vmax.f32 %v344, 0.0
      %v469 = vmax.f32 %v349, 0.0
      %v470 = vmax.f32 %v352, 0.0
      %v471 = vmax.f32 %v357, 0.0
      %v472 = vmax.f32 %v360, 0.0
      %v473 = vmax.f32 %v365, 0.0
      %v474 = vmax.f32 %v368, 0.0
      %v475 = vmax.f32 %v373, 0.0
      %v476 = vmax.f32 %v376, 0.0
      %v477 = vmax.f32 %v381, 0.0
      %v478 = vmax.f32 %v384, 0.0
      %v479 = vmax.f32 %v389, 0.0
      %v480 = vmax.f32 %v392, 0.0
      %v481 = vmax.f32 %v397, 0.0
      %v482 = vmax.f32 %v400, 0.0
      %v483 = vmax.f32 %v405, 0.0
      %v484 = vmax.f32 %v408, 0.0
      %v485 = vmax.f32 %v413, 0.0
      %v486 = vmax.f32 %v416, 0.0
      %v487 = vmax.f32 %v421, 0.0
      %v488 = vmax.f32 %v424, 0.0
      %v489 = vmax.f32 %v429, 0.0
      %v490 = vmax.f32 %v432, 0.0
      %v491 = vmax.f32 %v437, 0.0
      %v492 = vmax.f32 %v440, 0.0
      %v493 = vmax.f32 %v445, 0.0
      %v494 = vmax.f32 %v448, 0.0
      %v495 = vmax.f32 %v453, 0.0
      %v496 = vmax.f32 %v456, 0.0
      %v497 = vmax.f32 %v461, 0.0
      %v498 = vmax.f32 %v464, 0.0
      %v499 = vpack.c.bf16 %v468, %v467
      %v500 = vpack.c.bf16 %v470, %v469
      %v501 = vpack.c.bf16 %v472, %v471
      %v502 = vpack.c.bf16 %v474, %v473
      %v503 = vpack.c.bf16 %v476, %v475
      %v504 = vpack.c.bf16 %v478, %v477
      %v505 = vpack.c.bf16 %v480, %v479
      %v506 = vpack.c.bf16 %v482, %v481
      %v507 = vpack.c.bf16 %v484, %v483
      %v508 = vpack.c.bf16 %v486, %v485
      %v509 = vpack.c.bf16 %v488, %v487
      %v510 = vpack.c.bf16 %v490, %v489
      %v511 = vpack.c.bf16 %v492, %v491
      %v512 = vpack.c.bf16 %v494, %v493
      %v513 = vpack.c.bf16 %v496, %v495
      %v514 = vpack.c.bf16 %v498, %v497
      %v515 = vlaneseq
      %v516 = vshrl.u32 %v515, 7
      %v517 = vsub.s32 0, %v516
      %v518 = vrot.slane %v245, %v517
      %v535 = vunpack.c.l.b16 %v226
      %v536 = vunpack.c.l.b16 %v227
      %v537 = vunpack.c.l.b16 %v228
      %v538 = vunpack.c.l.b16 %v229
      %v539 = vunpack.c.l.b16 %v230
      %v540 = vunpack.c.l.b16 %v231
      %v541 = vunpack.c.l.b16 %v232
      %v542 = vunpack.c.l.b16 %v233
      %v543 = vunpack.c.l.b16 %v234
      %v544 = vunpack.c.l.b16 %v235
      %v545 = vunpack.c.l.b16 %v236
      %v546 = vunpack.c.l.b16 %v237
      %v547 = vunpack.c.l.b16 %v238
      %v548 = vunpack.c.l.b16 %v239
      %v549 = vunpack.c.l.b16 %v240
      %v550 = vunpack.c.l.b16 %v241
      %v551 = vpack.c.b16 %v536, %v535
      %v552 = vpack.c.b16 %v538, %v537
      %v553 = vpack.c.b16 %v540, %v539
      %v554 = vpack.c.b16 %v542, %v541
      %v555 = vpack.c.b16 %v544, %v543
      %v556 = vpack.c.b16 %v546, %v545
      %v557 = vpack.c.b16 %v548, %v547
      %v558 = vpack.c.b16 %v550, %v549
      %567 = vmatprep.subr.bf16.mxu0 0
      %568 = vmatpush1.bf16.msra.mxu0 %v551
      %569 = vmatprep.subr.bf16.mxu0 0
      %570 = vmatpush1.bf16.msra.mxu0 %v552
      %571 = vmatprep.subr.bf16.mxu0 0
      %572 = vmatpush1.bf16.msra.mxu0 %v553
      %573 = vmatprep.subr.bf16.mxu0 0
      %574 = vmatpush1.bf16.msra.mxu0 %v554
      %575 = vmatprep.subr.bf16.mxu0 0
      %576 = vmatpush1.bf16.msra.mxu0 %v555
      %577 = vmatprep.subr.bf16.mxu0 0
      %578 = vmatpush1.bf16.msra.mxu0 %v556
      %579 = vmatprep.subr.bf16.mxu0 0
      %580 = vmatpush1.bf16.msra.mxu0 %v557
      %581 = vmatprep.subr.bf16.mxu0 0
      %582 = vmatpush1.bf16.msra.mxu0 %v558
      %583 = vmatprep.subr.bf16.mxu0 0
      %584 = vmatpush1.bf16.msra.mxu0 0
      %585 = vmatprep.subr.bf16.mxu0 0
      %586 = vmatpush1.bf16.msra.mxu0 0
      %587 = vmatprep.subr.bf16.mxu0 0
      %588 = vmatpush1.bf16.msra.mxu0 0
      %589 = vmatprep.subr.bf16.mxu0 0
      %590 = vmatpush1.bf16.msra.mxu0 0
      %591 = vmatprep.subr.bf16.mxu0 0
      %592 = vmatpush1.bf16.msra.mxu0 0
      %593 = vmatprep.subr.bf16.mxu0 0
      %594 = vmatpush1.bf16.msra.mxu0 0
      %595 = vmatprep.subr.bf16.mxu0 0
      %596 = vmatpush1.bf16.msra.mxu0 0
      %597 = vmatprep.subr.bf16.mxu0 0
      %598 = vmatpush1.bf16.msra.mxu0 0
      %599 = vmatprep.mubr.bf16.mxu0 0
      %600 = vmatmul.mubr.bf16.gmra.mrb[0].mxu0 %v499
      %v601 = vpop.f32.mrb[0].mxu0
      %v602 = vadd.f32 %v518, %v601
      %v603 = vpop.f32.mrb[0].mxu0
      %v604 = vpop.f32.mrb[0].mxu0
      %v605 = vadd.f32 %v518, %v604
      %v606 = vpop.f32.mrb[0].mxu0
      %607 = vmatprep.mubr.bf16.mxu0 0
      %608 = vmatmul.mubr.bf16.gmra.mrb[0].mxu0 %v500
      %v609 = vpop.f32.mrb[0].mxu0
      %v610 = vadd.f32 %v518, %v609
      %v611 = vpop.f32.mrb[0].mxu0
      %v612 = vpop.f32.mrb[0].mxu0
      %v613 = vadd.f32 %v518, %v612
      %v614 = vpop.f32.mrb[0].mxu0
      %615 = vmatprep.mubr.bf16.mxu0 0
      %616 = vmatmul.mubr.bf16.gmra.mrb[0].mxu0 %v501
      %v617 = vpop.f32.mrb[0].mxu0
      %v618 = vadd.f32 %v518, %v617
      %v619 = vpop.f32.mrb[0].mxu0
      %v620 = vpop.f32.mrb[0].mxu0
      %v621 = vadd.f32 %v518, %v620
      %v622 = vpop.f32.mrb[0].mxu0
      %623 = vmatprep.mubr.bf16.mxu0 0
      %624 = vmatmul.mubr.bf16.gmra.mrb[0].mxu0 %v502
      %v625 = vpop.f32.mrb[0].mxu0
      %v626 = vadd.f32 %v518, %v625
      %v627 = vpop.f32.mrb[0].mxu0
      %v628 = vpop.f32.mrb[0].mxu0
      %v629 = vadd.f32 %v518, %v628
      %v630 = vpop.f32.mrb[0].mxu0
      %631 = vmatprep.mubr.bf16.mxu0 0
      %632 = vmatmul.mubr.bf16.gmra.mrb[0].mxu0 %v503
      %v633 = vpop.f32.mrb[0].mxu0
      %v634 = vadd.f32 %v518, %v633
      %v635 = vpop.f32.mrb[0].mxu0
      %v636 = vpop.f32.mrb[0].mxu0
      %v637 = vadd.f32 %v518, %v636
      %v638 = vpop.f32.mrb[0].mxu0
      %639 = vmatprep.mubr.bf16.mxu0 0
      %640 = vmatmul.mubr.bf16.gmra.mrb[0].mxu0 %v504
      %v641 = vpop.f32.mrb[0].mxu0
      %v642 = vadd.f32 %v518, %v641
      %v643 = vpop.f32.mrb[0].mxu0
      %v644 = vpop.f32.mrb[0].mxu0
      %v645 = vadd.f32 %v518, %v644
      %v646 = vpop.f32.mrb[0].mxu0
      %647 = vmatprep.mubr.bf16.mxu0 0
      %648 = vmatmul.mubr.bf16.gmra.mrb[0].mxu0 %v505
      %v649 = vpop.f32.mrb[0].mxu0
      %v650 = vadd.f32 %v518, %v649
      %v651 = vpop.f32.mrb[0].mxu0
      %v652 = vpop.f32.mrb[0].mxu0
      %v653 = vadd.f32 %v518, %v652
      %v654 = vpop.f32.mrb[0].mxu0
      %655 = vmatprep.mubr.bf16.mxu0 0
      %656 = vmatmul.mubr.bf16.gmra.mrb[0].mxu0 %v506
      %v657 = vpop.f32.mrb[0].mxu0
      %v658 = vadd.f32 %v518, %v657
      %v659 = vpop.f32.mrb[0].mxu0
      %v660 = vpop.f32.mrb[0].mxu0
      %v661 = vadd.f32 %v518, %v660
      %v662 = vpop.f32.mrb[0].mxu0
      %663 = vmatprep.mubr.bf16.mxu0 0
      %664 = vmatmul.mubr.bf16.gmra.mrb[0].mxu0 %v507
      %v665 = vpop.f32.mrb[0].mxu0
      %v666 = vadd.f32 %v518, %v665
      %v667 = vpop.f32.mrb[0].mxu0
      %v668 = vpop.f32.mrb[0].mxu0
      %v669 = vadd.f32 %v518, %v668
      %v670 = vpop.f32.mrb[0].mxu0
      %671 = vmatprep.mubr.bf16.mxu0 0
      %672 = vmatmul.mubr.bf16.gmra.mrb[0].mxu0 %v508
      %v673 = vpop.f32.mrb[0].mxu0
      %v674 = vadd.f32 %v518, %v673
      %v675 = vpop.f32.mrb[0].mxu0
      %v676 = vpop.f32.mrb[0].mxu0
      %v677 = vadd.f32 %v518, %v676
      %v678 = vpop.f32.mrb[0].mxu0
      %679 = vmatprep.mubr.bf16.mxu0 0
      %680 = vmatmul.mubr.bf16.gmra.mrb[0].mxu0 %v509
      %v681 = vpop.f32.mrb[0].mxu0
      %v682 = vadd.f32 %v518, %v681
      %v683 = vpop.f32.mrb[0].mxu0
      %v684 = vpop.f32.mrb[0].mxu0
      %v685 = vadd.f32 %v518, %v684
      %v686 = vpop.f32.mrb[0].mxu0
      %687 = vmatprep.mubr.bf16.mxu0 0
      %688 = vmatmul.mubr.bf16.gmra.mrb[0].mxu0 %v510
      %v689 = vpop.f32.mrb[0].mxu0
      %v690 = vadd.f32 %v518, %v689
      %v691 = vpop.f32.mrb[0].mxu0
      %v692 = vpop.f32.mrb[0].mxu0
      %v693 = vadd.f32 %v518, %v692
      %v694 = vpop.f32.mrb[0].mxu0
      %695 = vmatprep.mubr.bf16.mxu0 0
      %696 = vmatmul.mubr.bf16.gmra.mrb[0].mxu0 %v511
      %v697 = vpop.f32.mrb[0].mxu0
      %v698 = vadd.f32 %v518, %v697
      %v699 = vpop.f32.mrb[0].mxu0
      %v700 = vpop.f32.mrb[0].mxu0
      %v701 = vadd.f32 %v518, %v700
      %v702 = vpop.f32.mrb[0].mxu0
      %703 = vmatprep.mubr.bf16.mxu0 0
      %704 = vmatmul.mubr.bf16.gmra.mrb[0].mxu0 %v512
      %v705 = vpop.f32.mrb[0].mxu0
      %v706 = vadd.f32 %v518, %v705
      %v707 = vpop.f32.mrb[0].mxu0
      %v708 = vpop.f32.mrb[0].mxu0
      %v709 = vadd.f32 %v518, %v708
      %v710 = vpop.f32.mrb[0].mxu0
      %711 = vmatprep.mubr.bf16.mxu0 0
      %712 = vmatmul.mubr.bf16.gmra.mrb[0].mxu0 %v513
      %v713 = vpop.f32.mrb[0].mxu0
      %v714 = vadd.f32 %v518, %v713
      %v715 = vpop.f32.mrb[0].mxu0
      %v716 = vpop.f32.mrb[0].mxu0
      %v717 = vadd.f32 %v518, %v716
      %v718 = vpop.f32.mrb[0].mxu0
      %719 = vmatprep.mubr.bf16.mxu0 0
      %720 = vmatmul.mubr.bf16.gmra.mrb[0].mxu0 %v514
      %v721 = vpop.f32.mrb[0].mxu0
      %v722 = vadd.f32 %v518, %v721
      %v723 = vpop.f32.mrb[0].mxu0
      %v724 = vpop.f32.mrb[0].mxu0
      %v725 = vadd.f32 %v518, %v724
      %v726 = vpop.f32.mrb[0].mxu0
      %727 = vdwg.mxu0
      %v728 = vmax.f32 %v602, 0.0
      %v729 = vmax.f32 %v605, 0.0
      %v730 = vmax.f32 %v610, 0.0
      %v731 = vmax.f32 %v613, 0.0
      %v732 = vmax.f32 %v618, 0.0
      %v733 = vmax.f32 %v621, 0.0
      %v734 = vmax.f32 %v626, 0.0
      %v735 = vmax.f32 %v629, 0.0
      %v736 = vmax.f32 %v634, 0.0
      %v737 = vmax.f32 %v637, 0.0
      %v738 = vmax.f32 %v642, 0.0
      %v739 = vmax.f32 %v645, 0.0
      %v740 = vmax.f32 %v650, 0.0
      %v741 = vmax.f32 %v653, 0.0
      %v742 = vmax.f32 %v658, 0.0
      %v743 = vmax.f32 %v661, 0.0
      %v744 = vmax.f32 %v666, 0.0
      %v745 = vmax.f32 %v669, 0.0
      %v746 = vmax.f32 %v674, 0.0
      %v747 = vmax.f32 %v677, 0.0
      %v748 = vmax.f32 %v682, 0.0
      %v749 = vmax.f32 %v685, 0.0
      %v750 = vmax.f32 %v690, 0.0
      %v751 = vmax.f32 %v693, 0.0
      %v752 = vmax.f32 %v698, 0.0
      %v753 = vmax.f32 %v701, 0.0
      %v754 = vmax.f32 %v706, 0.0
      %v755 = vmax.f32 %v709, 0.0
      %v756 = vmax.f32 %v714, 0.0
      %v757 = vmax.f32 %v717, 0.0
      %v758 = vmax.f32 %v722, 0.0
      %v759 = vmax.f32 %v725, 0.0
      %v760 = vpack.c.bf16 %v729, %v728
      %v761 = vpack.c.bf16 %v731, %v730
      %v762 = vpack.c.bf16 %v733, %v732
      %v763 = vpack.c.bf16 %v735, %v734
      %v764 = vpack.c.bf16 %v737, %v736
      %v765 = vpack.c.bf16 %v739, %v738
      %v766 = vpack.c.bf16 %v741, %v740
      %v767 = vpack.c.bf16 %v743, %v742
      %v768 = vpack.c.bf16 %v745, %v744
      %v769 = vpack.c.bf16 %v747, %v746
      %v770 = vpack.c.bf16 %v749, %v748
      %v771 = vpack.c.bf16 %v751, %v750
      %v772 = vpack.c.bf16 %v753, %v752
      %v773 = vpack.c.bf16 %v755, %v754
      %v774 = vpack.c.bf16 %v757, %v756
      %v775 = vpack.c.bf16 %v759, %v758
      %777 = vset.pattern.permute.xlu0 0
      %778 = vperm.xlu0 %777, %v246
      %v779 = vpop.permute.xlu0 %778
      %781 = vmatprep.subr.bf16.mxu0 0
      %782 = vmatpush1.bf16.xpose.msra.mxu0 %v760
      %783 = vmatprep.subr.bf16.mxu0 0
      %784 = vmatpush1.bf16.xpose.msra.mxu0 %v761
      %785 = vmatprep.subr.bf16.mxu0 0
      %786 = vmatpush1.bf16.xpose.msra.mxu0 %v762
      %787 = vmatprep.subr.bf16.mxu0 0
      %788 = vmatpush1.bf16.xpose.msra.mxu0 %v763
      %789 = vmatprep.subr.bf16.mxu0 0
      %790 = vmatpush1.bf16.xpose.msra.mxu0 %v764
      %791 = vmatprep.subr.bf16.mxu0 0
      %792 = vmatpush1.bf16.xpose.msra.mxu0 %v765
      %793 = vmatprep.subr.bf16.mxu0 0
      %794 = vmatpush1.bf16.xpose.msra.mxu0 %v766
      %795 = vmatprep.subr.bf16.mxu0 0
      %796 = vmatpush1.bf16.xpose.msra.mxu0 %v767
      %797 = vmatprep.subr.bf16.mxu0 0
      %798 = vmatpush1.bf16.xpose.msra.mxu0 %v768
      %799 = vmatprep.subr.bf16.mxu0 0
      %800 = vmatpush1.bf16.xpose.msra.mxu0 %v769
      %801 = vmatprep.subr.bf16.mxu0 0
      %802 = vmatpush1.bf16.xpose.msra.mxu0 %v770
      %803 = vmatprep.subr.bf16.mxu0 0
      %804 = vmatpush1.bf16.xpose.msra.mxu0 %v771
      %805 = vmatprep.subr.bf16.mxu0 0
      %806 = vmatpush1.bf16.xpose.msra.mxu0 %v772
      %807 = vmatprep.subr.bf16.mxu0 0
      %808 = vmatpush1.bf16.xpose.msra.mxu0 %v773
      %809 = vmatprep.subr.bf16.mxu0 0
      %810 = vmatpush1.bf16.xpose.msra.mxu0 %v774
      %811 = vmatprep.subr.bf16.mxu0 0
      %812 = vmatpush1.bf16.xpose.msra.mxu0 %v775
      %813 = vmatprep.mubr.bf16.mxu0 0
      %814 = vmatmul.mubr.bf16.gmra.mrb[0].mxu0 %v243
      %v815 = vpop.f32.mrb[0].mxu0
      %v816 = vadd.f32 %v779, %v815
      %v817 = vpop.f32.mrb[0].mxu0
      %v818 = vadd.f32 %v779, %v817
      %v819 = vpop.f32.mrb[0].mxu0
      %v820 = vpop.f32.mrb[0].mxu0
      %821 = vdwg.mxu0
      %822 = vst [vmem:[%s172] sm:$0xff] %v816
      %823 = vst [vmem:[%s172 + $0x8] sm:$0xff] %v818
      %s824 = smul.u32 2, %s14
      %p825 = scmp.lt.s32.totalorder %s824, 3
      %s826 = scalar_select %p825, %s824, 3
      %s827 = smul.addr %s826, 8
      %s828 = scalar_lea.vmem %s3, %s827
      // Predicated region
      $region33: #{dqn_forward.1} parent=31 // pred_check
        %p829 = pneg %p100
      $region34: #{dqn_forward.1} parent=31 // pred_check_branch
        %831 = sbr.rel (%p829) target = $region36
      $region35: #{dqn_forward.1} parent=31 // pred_region
        %s832 = smul.u32 2, %s14
      $region36: #{dqn_forward.1} parent=31 // pred_fallthru
        _
    $region32: #{dqn_forward.1} parent=5 // pred_fallthru
      _
    %p833 = scmp.le.s32.totalorder 2, %s9
    // Predicated region
    $region37: #{dqn_forward.1} parent=5 // pred_check
      %p834 = pneg %p833
    $region38: #{dqn_forward.1} parent=5 // pred_check_branch
      %836 = sbr.rel (%p834) target = $region40
    $region39: #{dqn_forward.1} parent=5 // pred_region
      %s837 = ssub.s32 %s9, 2
      // Predicated region
      $region41: #{dqn_forward.1} parent=39 // pred_check
        %p838 = pneg %p106
      $region42: #{dqn_forward.1} parent=39 // pred_check_branch
        %840 = sbr.rel (%p838) target = $region44
      $region43: #{dqn_forward.1} parent=39 // pred_region
        %s841 = smul.u32 2, %s15
        %p842 = scmp.lt.s32.totalorder %s841, 3
        %s843 = scalar_select %p842, %s841, 3
        %s844 = smul.addr %s843, 8
        %s845 = scalar_lea.vmem %s3, %s844
      $region44: #{dqn_forward.1} parent=39 // pred_fallthru
        _
    $region40: #{dqn_forward.1} parent=5 // pred_fallthru
      _
  $region6: #{dqn_forward.1} parent=0 // loop_footer
    %s13 = sadd.s32 1, %s9
  $region7: #{dqn_forward.1} parent=0 // loop_footer_branch
    %8 = sbr.rel target = $region3
  $region8: #{dqn_forward.1} parent=0 // loop_exit
    _

</llo_original>
